<compile_context>
chip_gen: v6e
topology: v6e:2x2x1
jax: 0.10.0
libtpu: 0.0.40
codegen_flags: <defaults>
</compile_context>

<pallas_src>
import jax
import jax.numpy as jnp
from jax.experimental import pallas as pl
from jax.experimental.pallas import tpu as pltpu

_LANE = 128


def _round_up(n, m):
    return ((n + m - 1) // m) * m


def _conv_mlp_kernel(x_ref, w1_ref, w2_ref, out_ref):
    """One (batch, spatial-tile) block: fc1 -> ReLU -> fc2, all in VMEM / vregs.

    x_ref  : (Cin,  TILE)   lane-dense spatial tile (native dtype)
    w1_ref : (Hid,  Cin)    fc1 weight (Conv3d 1x1x1, bias=False)
    w2_ref : (Cout, Hid)    fc2 weight (Conv3d 1x1x1, bias=False)
    out_ref: (Cout, TILE)
    """
    x = x_ref[...]                                              # (Cin, TILE)
    w1 = w1_ref[...]
    w2 = w2_ref[...]
    h = jnp.dot(w1, x, preferred_element_type=jnp.float32)      # MXU, f32 acc
    h = jnp.maximum(h, 0.0)                                     # ReLU (act default)
    h = h.astype(w2.dtype)                                      # bf16 path feeds MXU natively
    o = jnp.dot(w2, h, preferred_element_type=jnp.float32)      # (Cout, TILE)
    out_ref[...] = o.astype(out_ref.dtype)


def _pick_tile(S, B, c_in, hid, c_out, itembytes, requested):
    """Choose a spatial (lane) tile width.

    Budget ~12 MiB of VMEM for the per-step working set:
      2x double-buffered input  : 2 * c_in  * tile * itembytes
      2x double-buffered output : 2 * c_out * tile * itembytes
      f32 intermediates (h, o)  : (hid + c_out) * tile * 4
    12 MiB keeps us inside v5e's 16 MiB default scoped VMEM and leaves ample
    headroom on v6e (32 MiB scoped) and v7x (32 MiB scoped / 64 MiB physical).
    """
    per_lane = 2 * (c_in + c_out) * itembytes + (hid + c_out) * 4
    vmem_cap = max(_LANE, ((12 << 20) // per_lane) // _LANE * _LANE)
    tile = min(requested, vmem_cap)

    if B == 1 and S > 2 * _LANE:
        # v7x megacore: ensure >= 2 spatial blocks so both TensorCores get work.
        tile = min(tile, _round_up(pl.cdiv(S, 2), _LANE))

    if tile >= S:
        return S                     # single block == full trailing dim (no 128 constraint)
    return max(_LANE, (tile // _LANE) * _LANE)


def conv_mlp_forward(x, w1, w2, *, tile=8192):
    """ConvMlp forward.

    x : (B, Cin, T, H, W)   (PyTorch Conv3d layout)
    w1: (Hid, Cin)          fc1.weight[..., 0, 0, 0]  (kernel_size=1, bias=False)
    w2: (Cout, Hid)         fc2.weight[..., 0, 0, 0]
    returns (B, Cout, T, H, W)
    """
    B, C, T, H, W = x.shape
    hid, c_in = w1.shape
    c_out, hid2 = w2.shape
    assert c_in == C and hid2 == hid

    S = T * H * W
    xf = x.reshape(B, C, S)                       # free reshape on contiguous memory

    itembytes = jnp.dtype(x.dtype).itemsize
    tile = _pick_tile(S, B, c_in, hid, c_out, itembytes, tile)
    n_s = pl.cdiv(S, tile)                        # ragged last block -> masked edge store
    grid = (B, n_s)

    w_bytes = (hid * c_in + c_out * hid) * jnp.dtype(w1.dtype).itemsize
    cost = pl.CostEstimate(
        flops=2 * B * S * (c_in * hid + hid * c_out),
        transcendentals=0,
        bytes_accessed=B * S * (c_in + c_out) * itembytes + w_bytes,
    )

    # NOTE: if profiling ever shows exposed DMA at very large tiles, the x spec
    # can take pipeline_mode=pl.Buffered(3) for a third input buffer.
    out = pl.pallas_call(
        _conv_mlp_kernel,
        out_shape=jax.ShapeDtypeStruct((B, c_out, S), x.dtype),
        grid=grid,
        in_specs=[
            pl.BlockSpec((None, C, tile), lambda b, s: (b, 0, s)),   # x tile
            pl.BlockSpec((hid, C), lambda b, s: (0, 0)),             # fc1 weight (resident)
            pl.BlockSpec((c_out, hid), lambda b, s: (0, 0)),         # fc2 weight (resident)
        ],
        out_specs=pl.BlockSpec((None, c_out, tile), lambda b, s: (b, 0, s)),
        compiler_params=pltpu.CompilerParams(
            dimension_semantics=("parallel", "parallel"),
        ),
        cost_estimate=cost,
    )(xf, w1, w2)

    return out.reshape(B, c_out, T, H, W)


def init_params(key, c_in, hidden, c_out, dtype=jnp.float32):
    """Deterministic synthetic parameters (Conv3d 1x1x1 weights, no bias)."""
    k1, k2 = jax.random.split(key)
    return {
        "w1": (0.1 * jax.random.normal(k1, (hidden, c_in), jnp.float32)).astype(dtype),
        "w2": (0.1 * jax.random.normal(k2, (c_out, hidden), jnp.float32)).astype(dtype),
    }


def reference_forward(x, w1, w2):
    """Pure-JAX reference mirroring the PyTorch ConvMlp forward."""
    h = jnp.einsum("oc,bcxyz->boxyz", w1, x, precision=jax.lax.Precision.HIGHEST)
    h = jnp.maximum(h, 0.0)
    o = jnp.einsum("po,boxyz->bpxyz", w2, h, precision=jax.lax.Precision.HIGHEST)
    return o


if __name__ == "__main__":
    key = jax.random.PRNGKey(0)

    # Test 1: small shapes consistent with the module: batch=2, channels=16,
    # hidden=32, seq(T)=4, spatial=16x16 -> flattened spatial S=1024 (even tiling).
    B, C, HID, T, H, W = 2, 16, 32, 4, 16, 16
    kx, kp, kx2 = jax.random.split(key, 3)
    x = jax.random.normal(kx, (B, C, T, H, W), dtype=jnp.float32)
    params = init_params(kp, C, HID, C)

    out = jax.block_until_ready(conv_mlp_forward(x, params["w1"], params["w2"]))
    ref = jax.block_until_ready(reference_forward(x, params["w1"], params["w2"]))
    assert out.shape == (B, C, T, H, W), out.shape
    max_err = float(jnp.max(jnp.abs(out - ref)))
    assert max_err < 2e-3, f"test1 max abs err {max_err}"

    # Test 2: ragged spatial extent (S=300 not a multiple of the tile) with B=1,
    # exercising the masked edge-block store and the megacore tile split.
    B2, T2, H2, W2 = 1, 3, 10, 10
    x2 = jax.random.normal(kx2, (B2, C, T2, H2, W2), dtype=jnp.float32)
    out2 = jax.block_until_ready(
        conv_mlp_forward(x2, params["w1"], params["w2"], tile=128))
    ref2 = jax.block_until_ready(
        reference_forward(x2, params["w1"], params["w2"]))
    assert out2.shape == (B2, C, T2, H2, W2), out2.shape
    max_err2 = float(jnp.max(jnp.abs(out2 - ref2)))
    assert max_err2 < 2e-3, f"test2 max abs err {max_err2}"

    print("KERNEL_OK")
</pallas_src>

<mosaic_0001>
module attributes {stable_mosaic.version = 11 : i64} {
  func.func @_conv_mlp_kernel(%arg0: i32, %arg1: i32, %arg2: memref<1x16x1024xf32, #tpu.memory_space<vmem>>, %arg3: memref<32x16xf32, #tpu.memory_space<vmem>>, %arg4: memref<16x32xf32, #tpu.memory_space<vmem>>, %arg5: memref<1x16x1024xf32, #tpu.memory_space<vmem>>) attributes {dimension_semantics = [#tpu.dimension_semantics<parallel>, #tpu.dimension_semantics<parallel>], iteration_bounds = array<i64: 2, 1>, scalar_prefetch = 0 : i64, scratch_operands = 0 : i64, tpu.core_type = #tpu.core_type<tc>, window_params = [{transform_indices = @transform_0, window_bounds = array<i64: 1, 16, 1024>}, {pipeline_mode = #tpu.pipeline_mode<synchronous>, transform_indices = @transform_1, window_bounds = array<i64: 32, 16>}, {pipeline_mode = #tpu.pipeline_mode<synchronous>, transform_indices = @transform_2, window_bounds = array<i64: 16, 32>}, {transform_indices = @transform_3, window_bounds = array<i64: 1, 16, 1024>}]} {
    %c0 = arith.constant 0 : index
    %c0_0 = arith.constant 0 : index
    %c0_1 = arith.constant 0 : index
    %0 = vector.load %arg2[%c0, %c0_0, %c0_1] : memref<1x16x1024xf32, #tpu.memory_space<vmem>>, vector<1x16x1024xf32>
    %1 = vector.shape_cast %0 : vector<1x16x1024xf32> to vector<16x1024xf32>
    %c0_2 = arith.constant 0 : index
    %c0_3 = arith.constant 0 : index
    %2 = vector.load %arg3[%c0_2, %c0_3] : memref<32x16xf32, #tpu.memory_space<vmem>>, vector<32x16xf32>
    %c0_4 = arith.constant 0 : index
    %c0_5 = arith.constant 0 : index
    %3 = vector.load %arg4[%c0_4, %c0_5] : memref<16x32xf32, #tpu.memory_space<vmem>>, vector<16x32xf32>
    %cst = arith.constant dense<0.000000e+00> : vector<32x1024xf32>
    %4 = tpu.matmul %2, %1, %cst {dimension_numbers = #tpu.dot_dimension_numbers<[1], [0], [0], [1], [0, 0, 1, 1], [], []>} : vector<32x16xf32>, vector<16x1024xf32>, vector<32x1024xf32> -> vector<32x1024xf32>
    %cst_6 = arith.constant 0.000000e+00 : f32
    %5 = vector.broadcast %cst_6 : f32 to vector<32x1024xf32>
    %6 = arith.maximumf %4, %5 : vector<32x1024xf32>
    %cst_7 = arith.constant dense<0.000000e+00> : vector<16x1024xf32>
    %7 = tpu.matmul %3, %6, %cst_7 {dimension_numbers = #tpu.dot_dimension_numbers<[1], [0], [0], [1], [0, 0, 1, 1], [], []>} : vector<16x32xf32>, vector<32x1024xf32>, vector<16x1024xf32> -> vector<16x1024xf32>
    %c0_8 = arith.constant 0 : index
    %c0_9 = arith.constant 0 : index
    %c0_10 = arith.constant 0 : index
    %8 = vector.load %arg5[%c0_8, %c0_9, %c0_10] : memref<1x16x1024xf32, #tpu.memory_space<vmem>>, vector<1x16x1024xf32>
    %9 = vector.shape_cast %8 : vector<1x16x1024xf32> to vector<16x1024xf32>
    %10 = vector.shape_cast %7 : vector<16x1024xf32> to vector<1x16x1024xf32>
    tpu.vector_store %arg5[%c0_8, %c0_9, %c0_10], %10 {strides = array<i32>} : memref<1x16x1024xf32, #tpu.memory_space<vmem>>, vector<1x16x1024xf32>,
    return
  }
  func.func @transform_0(%arg0: i32, %arg1: i32) -> (i32, i32, i32) {
    %c0_i32 = arith.constant 0 : i32
    %c0_i32_0 = arith.constant 0 : i32
    return %arg0, %c0_i32, %arg1 : i32, i32, i32
  }
  func.func @transform_1(%arg0: i32, %arg1: i32) -> (i32, i32) {
    %c0_i32 = arith.constant 0 : i32
    %c0_i32_0 = arith.constant 0 : i32
    %c0_i32_1 = arith.constant 0 : i32
    return %c0_i32, %c0_i32_0 : i32, i32
  }
  func.func @transform_2(%arg0: i32, %arg1: i32) -> (i32, i32) {
    %c0_i32 = arith.constant 0 : i32
    %c0_i32_0 = arith.constant 0 : i32
    %c0_i32_1 = arith.constant 0 : i32
    return %c0_i32, %c0_i32_0 : i32, i32
  }
  func.func @transform_3(%arg0: i32, %arg1: i32) -> (i32, i32, i32) {
    %c0_i32 = arith.constant 0 : i32
    %c0_i32_0 = arith.constant 0 : i32
    return %arg0, %c0_i32, %arg1 : i32, i32, i32
  }
}

</mosaic_0001>

<llo_original>
// kernel: tpu_custom_call.1
$region0: #{tpu_custom_call.1}
  #allocation0 [shape = 'u32[]', space=smem, size = 0x4, offset = 0x4, fixed_abs, tag = 'smem constant byte address 0x4 - core index']
  #allocation1 [shape = 'u32[144,128]{1,0:T(1,128)}', space=vmem, size = 0x12000, scoped, tag = 'internal scratch']
  %s0 = inlined_call_operand.hbm [shape: f32[2,16,1024], index: 0, kind: input, shape index: {}]
  %s1 = inlined_call_operand.vmem [shape: f32[32,16], index: 1, kind: input, shape index: {}]
  %s2 = inlined_call_operand.vmem [shape: f32[16,32], index: 2, kind: input, shape index: {}]
  %s3 = inlined_call_operand.hbm [shape: f32[2,16,1024], index: 3, kind: output, shape index: {}]
  %s4 = sld [smem:[#allocation0]]
  $region49: #{tpu_custom_call.1} parent=0
    _
  %s6 = ssub.s32 1, %s4
  %s7 = scalar_select 0, %s6, %s4
  $region1: #{tpu_custom_call.1} parent=0
    #allocation2 [shape = 'u8[131072]{0}', space=vmem, size = 0x20000, scoped, tag = 'input window, operand 0']
    #allocation3 [shape = 's32[2]{0}', space=sflag, size = 0x8, scoped, tag = 'scoped memory for tpu_custom_call.1']
    #allocation4 [shape = 's32[2]{0}', space=sflag, size = 0x8, scoped, tag = 'scoped memory for tpu_custom_call.1']
    #allocation5 [shape = 'u8[131072]{0}', space=vmem, size = 0x20000, scoped, tag = 'output window, operand 0']
    %8 = vsyncpa [#allocation3], 0
    %s9 = scalar_lea.sflag [#allocation3], 1
    %10 = vsyncpa %s9, 0
    %11 = vsyncpa [#allocation4], 0
    %s12 = scalar_lea.sflag [#allocation4], 1
    %13 = vsyncpa %s12, 0
    loop: start=0, step=1, limit=4
    $region2: #{tpu_custom_call.1} parent=1 // loop_pre_header
      _
    $region3: #{tpu_custom_call.1} parent=1 // loop_header
      %s15 = sphi 0, %s19
      %p16 = scmp.ge.s32.totalorder %s15, 4
      %s22 = sphi 0, %s34
      %s23 = sphi 0, %s30
      %s24 = sphi 0, %s22
      %s25 = sphi 0, %s23
      %s26 = sphi 0, %s24
      %s27 = sphi 0, %s25
      %s39 = sphi 0, %s41
      %s42 = sphi 0, %s39
      %s43 = sphi 0, %s42
      %s59 = sphi 0, %s43
      %s63 = sphi 0, %s63
      %s65 = sphi 0, %s63
      %s66 = sphi 0, %s65
      %s80 = sphi 0, %s66
      %s84 = sphi 0, %s84
      %s86 = sphi 0, %s84
      %s87 = sphi 0, %s86
      %s101 = sphi 0, %s87
      %s109 = sphi 0, %s111
      %s112 = sphi 0, %s109
      %s113 = sphi 0, %s112
      %s129 = sphi 0, %s113
    $region4: #{tpu_custom_call.1} parent=1 // loop_header_branch
      %18 = sbr.rel (%p16) target = $region8
    $region5: #{tpu_custom_call.1} parent=1 // loop_body
      %s20 = ssub.s32 %s15, 1
      %s21 = ssub.s32 %s15, 2
      %s28 = sadd.s32 1, %s23
      %p29 = scmp.ge.s32.totalorder %s28, 1
      %s30 = scalar_select %p29, 0, %s28
      %s31 = sadd.s32 1, %s22
      %s32 = scalar_select %p29, %s31, %s22
      %p33 = scmp.ge.s32.totalorder %s32, 2
      %s34 = scalar_select %p33, 0, %s32
      %s35 = ssub.s32 %s22, %s34
      %s36 = ssub.s32 %s23, %s30
      %s37 = sor.u32 %s35, %s36
      %p38 = scmp.eq.s32.totalorder %s37, 0
      %s40 = sadd.s32 %s39, 1
      %s41 = scalar_select %p38, %s39, %s40
      %p44 = pneg %p38
      %p45 = scmp.eq.s32.totalorder %s15, 1
      %p46 = por %p44, %p45
      %p47 = scmp.ne.s32.totalorder %s39, %s42
      %p48 = scmp.eq.s32.totalorder %s15, 0
      %p49 = por %p47, %p48
      %p50 = scmp.ne.s32.totalorder %s39, %s42
      %p51 = scmp.eq.s32.totalorder %s20, 1
      %p52 = por %p50, %p51
      %p53 = scmp.ne.s32.totalorder %s42, %s43
      %p54 = scmp.eq.s32.totalorder %s20, 0
      %p55 = por %p53, %p54
      %p56 = scmp.ne.s32.totalorder %s42, %s43
      %p57 = scmp.eq.s32.totalorder %s21, 1
      %p58 = por %p56, %p57
      %p60 = scmp.ne.s32.totalorder %s43, %s59
      %p61 = scmp.eq.s32.totalorder %s21, 0
      %p62 = por %p60, %p61
      %s64 = sadd.s32 %s63, 1
      %p67 = scmp.eq.s32.totalorder %s15, 1
      %p68 = scmp.ne.s32.totalorder %s63, %s65
      %p69 = scmp.eq.s32.totalorder %s15, 0
      %p70 = por %p68, %p69
      %p71 = scmp.ne.s32.totalorder %s63, %s65
      %p72 = scmp.eq.s32.totalorder %s20, 1
      %p73 = por %p71, %p72
      %p74 = scmp.ne.s32.totalorder %s65, %s66
      %p75 = scmp.eq.s32.totalorder %s20, 0
      %p76 = por %p74, %p75
      %p77 = scmp.ne.s32.totalorder %s65, %s66
      %p78 = scmp.eq.s32.totalorder %s21, 1
      %p79 = por %p77, %p78
      %p81 = scmp.ne.s32.totalorder %s66, %s80
      %p82 = scmp.eq.s32.totalorder %s21, 0
      %p83 = por %p81, %p82
      %s85 = sadd.s32 %s84, 1
      %p88 = scmp.eq.s32.totalorder %s15, 1
      %p89 = scmp.ne.s32.totalorder %s84, %s86
      %p90 = scmp.eq.s32.totalorder %s15, 0
      %p91 = por %p89, %p90
      %p92 = scmp.ne.s32.totalorder %s84, %s86
      %p93 = scmp.eq.s32.totalorder %s20, 1
      %p94 = por %p92, %p93
      %p95 = scmp.ne.s32.totalorder %s86, %s87
      %p96 = scmp.eq.s32.totalorder %s20, 0
      %p97 = por %p95, %p96
      %p98 = scmp.ne.s32.totalorder %s86, %s87
      %p99 = scmp.eq.s32.totalorder %s21, 1
      %p100 = por %p98, %p99
      %p102 = scmp.ne.s32.totalorder %s87, %s101
      %p103 = scmp.eq.s32.totalorder %s21, 0
      %p104 = por %p102, %p103
      %s105 = ssub.s32 %s22, %s34
      %s106 = ssub.s32 %s23, %s30
      %s107 = sor.u32 %s105, %s106
      %p108 = scmp.eq.s32.totalorder %s107, 0
      %s110 = sadd.s32 %s109, 1
      %s111 = scalar_select %p108, %s109, %s110
      %p114 = pneg %p108
      %p115 = scmp.eq.s32.totalorder %s15, 1
      %p116 = por %p114, %p115
      %p117 = scmp.ne.s32.totalorder %s109, %s112
      %p118 = scmp.eq.s32.totalorder %s15, 0
      %p119 = por %p117, %p118
      %p120 = scmp.ne.s32.totalorder %s109, %s112
      %p121 = scmp.eq.s32.totalorder %s20, 1
      %p122 = por %p120, %p121
      %p123 = scmp.ne.s32.totalorder %s112, %s113
      %p124 = scmp.eq.s32.totalorder %s20, 0
      %p125 = por %p123, %p124
      %p126 = scmp.ne.s32.totalorder %s112, %s113
      %p127 = scmp.eq.s32.totalorder %s21, 1
      %p128 = por %p126, %p127
      %p130 = scmp.ne.s32.totalorder %s113, %s129
      %p131 = scmp.eq.s32.totalorder %s21, 0
      %p132 = por %p130, %p131
      %p133 = scmp.le.s32.totalorder 1, %s15
      %p134 = scmp.lt.s32.totalorder %s15, 3
      %p135 = pnand %p133, %p134
      %p136 = pneg %p135
      // Predicated region
      $region9: #{tpu_custom_call.1} parent=5 // pred_check
        _
      $region10: #{tpu_custom_call.1} parent=5 // pred_check_branch
        %138 = sbr.rel (%p135) target = $region12
      $region11: #{tpu_custom_call.1} parent=5 // pred_region
        %s139 = ssub.s32 %s15, 1
        // Predicated region
        $region13: #{tpu_custom_call.1} parent=11 // pred_check
          %p140 = pneg %p76
        $region14: #{tpu_custom_call.1} parent=11 // pred_check_branch
          %142 = sbr.rel (%p140) target = $region16
        $region15: #{tpu_custom_call.1} parent=11 // pred_region
          _
        $region16: #{tpu_custom_call.1} parent=11 // pred_fallthru
          _
        // Predicated region
        $region17: #{tpu_custom_call.1} parent=11 // pred_check
          %p143 = pneg %p97
        $region18: #{tpu_custom_call.1} parent=11 // pred_check_branch
          %145 = sbr.rel (%p143) target = $region20
        $region19: #{tpu_custom_call.1} parent=11 // pred_region
          _
        $region20: #{tpu_custom_call.1} parent=11 // pred_fallthru
          _
      $region12: #{tpu_custom_call.1} parent=5 // pred_fallthru
        _
      %p146 = scmp.lt.s32.totalorder %s15, 2
      // Predicated region
      $region21: #{tpu_custom_call.1} parent=5 // pred_check
        %p147 = pneg %p146
      $region22: #{tpu_custom_call.1} parent=5 // pred_check_branch
        %149 = sbr.rel (%p147) target = $region24
      $region23: #{tpu_custom_call.1} parent=5 // pred_region
        // Predicated region
        $region25: #{tpu_custom_call.1} parent=23 // pred_check
          %p150 = pneg %p49
        $region26: #{tpu_custom_call.1} parent=23 // pred_check_branch
          %152 = sbr.rel (%p150) target = $region28
        $region27: #{tpu_custom_call.1} parent=23 // pred_region
          %s153 = sand.u32 %s39, 1
          %s154 = scalar_lea.sflag [#allocation3], %s153
          %s155 = sand.u32 %s39, 1
          %s156 = smul.addr %s155, 128
          %s157 = scalar_lea.vmem [#allocation2], %s156
          %s158 = smul.u32 8, %s23
          %s160 = ssub.s32 2048, 2048
          %161 = vsyncadd %s154, %s160
          %s162 = smul.addr %s22, 16
          %s163 = sadd.s32 %s158, %s162
          %s164 = smul.addr %s163, 128
          %s165 = scalar_lea.hbm %s0, %s164
          %s166 = sshll.u32 %s157, 4
          %s167 = int_to_ptr.vmem [resolvable:$true] %s166
          %172 = dma.hbm_to_vmem [thread:$0]  %s165, 2048, %s167, %s154, 1024, 1024, 64
        $region28: #{tpu_custom_call.1} parent=23 // pred_fallthru
          _
      $region24: #{tpu_custom_call.1} parent=5 // pred_fallthru
        _
      %p173 = scmp.le.s32.totalorder 1, %s15
      %p174 = scmp.lt.s32.totalorder %s15, 3
      %p175 = pnand %p173, %p174
      %p176 = pneg %p175
      // Predicated region
      $region29: #{tpu_custom_call.1} parent=5 // pred_check
        _
      $region30: #{tpu_custom_call.1} parent=5 // pred_check_branch
        %178 = sbr.rel (%p175) target = $region32
      $region31: #{tpu_custom_call.1} parent=5 // pred_region
        %s179 = ssub.s32 %s15, 1
        %s180 = sand.u32 %s42, 1
        %s181 = scalar_lea.sflag [#allocation3], %s180
        %s182 = sand.u32 %s42, 1
        %s183 = smul.addr %s182, 128
        %s184 = scalar_lea.vmem [#allocation2], %s183
        // Predicated region
        $region33: #{tpu_custom_call.1} parent=31 // pred_check
          %p185 = pneg %p55
        $region34: #{tpu_custom_call.1} parent=31 // pred_check_branch
          %187 = sbr.rel (%p185) target = $region36
        $region35: #{tpu_custom_call.1} parent=31 // pred_region
          %188 = dma.done %s181, 2048
        $region36: #{tpu_custom_call.1} parent=31 // pred_fallthru
          _
        %s189 = sand.u32 %s42, 1
        %s190 = scalar_lea.sflag [#allocation3], %s189
        %s191 = sand.u32 %s42, 1
        %s192 = smul.addr %s191, 128
        %s193 = scalar_lea.vmem [#allocation2], %s192
        %p194 = pneg %p55
        %p195 = pneg %p52
        %p196 = pneg %p76
        %p197 = pneg %p73
        %p198 = pneg %p97
        %p199 = pneg %p94
        %p200 = pneg %p125
        %p201 = pneg %p122
        %s202 = sand.u32 %s112, 1
        %s203 = scalar_lea.sflag [#allocation4], %s202
        %s204 = sand.u32 %s112, 1
        %s205 = smul.addr %s204, 128
        %s206 = scalar_lea.vmem [#allocation5], %s205
        %s207 = smul.u32 8, %s25
        %s208 = smul.u32 8, %s25
        %v209 = vld [vmem:[%s184] sm:$0xff]
        %v210 = vld [vmem:[%s184 + $0x8] sm:$0xff]
        %v211 = vld [vmem:[%s184 + $0x10] sm:$0xff]
        %v212 = vld [vmem:[%s184 + $0x18] sm:$0xff]
        %v213 = vld [vmem:[%s184 + $0x20] sm:$0xff]
        %v214 = vld [vmem:[%s184 + $0x28] sm:$0xff]
        %v215 = vld [vmem:[%s184 + $0x30] sm:$0xff]
        %v216 = vld [vmem:[%s184 + $0x38] sm:$0xff]
        %v217 = vld [vmem:[%s184 + $0x40] sm:$0xff]
        %v218 = vld [vmem:[%s184 + $0x48] sm:$0xff]
        %v219 = vld [vmem:[%s184 + $0x50] sm:$0xff]
        %v220 = vld [vmem:[%s184 + $0x58] sm:$0xff]
        %v221 = vld [vmem:[%s184 + $0x60] sm:$0xff]
        %v222 = vld [vmem:[%s184 + $0x68] sm:$0xff]
        %v223 = vld [vmem:[%s184 + $0x70] sm:$0xff]
        %v224 = vld [vmem:[%s184 + $0x78] sm:$0xff]
        %v225 = vld [vmem:[%s1] sm:$0xff]
        %v226 = vld [vmem:[%s1 + $0x8] sm:$0xff]
        %v227 = vld [vmem:[%s1 + $0x10] sm:$0xff]
        %v228 = vld [vmem:[%s1 + $0x18] sm:$0xff]
        %v229 = vld [vmem:[%s2] sm:$0xff]
        %v230 = vld [vmem:[%s2 + $0x8] sm:$0xff]
        %vm231 = vcmask 130048
        %v233 = vsel %vm231, %v225, 0
        %v236 = vsel %vm231, %v226, 0
        %v239 = vsel %vm231, %v227, 0
        %v242 = vsel %vm231, %v228, 0
        %244 = vmatprep.subr.mxu0 0.0
        %245 = vmatpush1.msra.mxu0 0.0
        %246 = vmatprep.subr.mxu0 0.0
        %247 = vmatpush1.msra.mxu0 0.0
        %248 = vmatprep.subr.mxu0 0.0
        %249 = vmatpush1.msra.mxu0 0.0
        %250 = vmatprep.subr.mxu0 0.0
        %251 = vmatpush1.msra.mxu0 0.0
        %252 = vmatprep.subr.mxu0 0.0
        %253 = vmatpush1.msra.mxu0 0.0
        %254 = vmatprep.subr.mxu0 0.0
        %255 = vmatpush1.msra.mxu0 0.0
        %256 = vmatprep.subr.mxu0 0.0
        %257 = vmatpush1.msra.mxu0 0.0
        %258 = vmatprep.subr.mxu0 0.0
        %259 = vmatpush1.msra.mxu0 0.0
        %260 = vmatprep.subr.mxu0 0.0
        %261 = vmatpush1.msra.mxu0 0.0
        %262 = vmatprep.subr.mxu0 0.0
        %263 = vmatpush1.msra.mxu0 0.0
        %264 = vmatprep.subr.mxu0 0.0
        %265 = vmatpush1.msra.mxu0 0.0
        %266 = vmatprep.subr.mxu0 0.0
        %267 = vmatpush1.msra.mxu0 0.0
        %268 = vmatprep.subr.mxu0 0.0
        %269 = vmatpush1.msra.mxu0 0.0
        %270 = vmatprep.subr.mxu0 0.0
        %271 = vmatpush1.msra.mxu0 0.0
        %272 = vmatprep.subr.mxu0 %v218
        %273 = vmatpush1.msra.mxu0 %v217
        %274 = vmatprep.subr.mxu0 %v210
        %275 = vmatpush1.msra.mxu0 %v209
        %276 = vmatprep.subr.mxu0 0.0
        %277 = vmatpush2.msra.mxu0 0.0
        %278 = vmatprep.subr.mxu0 0.0
        %279 = vmatpush2.msra.mxu0 0.0
        %280 = vmatprep.subr.mxu0 0.0
        %281 = vmatpush2.msra.mxu0 0.0
        %282 = vmatprep.subr.mxu0 0.0
        %283 = vmatpush2.msra.mxu0 0.0
        %284 = vmatprep.subr.mxu0 0.0
        %285 = vmatpush2.msra.mxu0 0.0
        %286 = vmatprep.subr.mxu0 0.0
        %287 = vmatpush2.msra.mxu0 0.0
        %288 = vmatprep.subr.mxu0 0.0
        %289 = vmatpush2.msra.mxu0 0.0
        %290 = vmatprep.subr.mxu0 0.0
        %291 = vmatpush2.msra.mxu0 0.0
        %292 = vmatprep.subr.mxu0 0.0
        %293 = vmatpush2.msra.mxu0 0.0
        %294 = vmatprep.subr.mxu0 0.0
        %295 = vmatpush2.msra.mxu0 0.0
        %296 = vmatprep.subr.mxu0 0.0
        %297 = vmatpush2.msra.mxu0 0.0
        %298 = vmatprep.subr.mxu0 0.0
        %299 = vmatpush2.msra.mxu0 0.0
        %300 = vmatprep.subr.mxu0 0.0
        %301 = vmatpush2.msra.mxu0 0.0
        %302 = vmatprep.subr.mxu0 0.0
        %303 = vmatpush2.msra.mxu0 0.0
        %304 = vmatprep.subr.mxu0 0.0
        %305 = vmatpush2.msra.mxu0 0.0
        %306 = vmatprep.subr.mxu0 0.0
        %307 = vmatpush2.msra.mxu0 0.0
        %308 = vmatprep.mubr.f32.mxu0 0.0
        %309 = vmatmul.mubr.f32.gmra.mxu0 %v233
        %v310 = vpop.f32.mrf.mxu0
        %v311 = vadd.f32 0.0, %v310
        %v312 = vpop.f32.mrf.mxu0
        %v313 = vadd.f32 0.0, %v312
        %314 = vmatprep.mubr.f32.mxu0 0.0
        %315 = vmatmul.mubr.f32.gmra.mxu0 %v236
        %v316 = vpop.f32.mrf.mxu0
        %v317 = vadd.f32 0.0, %v316
        %v318 = vpop.f32.mrf.mxu0
        %v319 = vadd.f32 0.0, %v318
        %320 = vmatprep.mubr.f32.mxu0 0.0
        %321 = vmatmul.mubr.f32.gmra.mxu0 %v239
        %v322 = vpop.f32.mrf.mxu0
        %v323 = vadd.f32 0.0, %v322
        %v324 = vpop.f32.mrf.mxu0
        %v325 = vadd.f32 0.0, %v324
        %326 = vmatprep.mubr.f32.mxu0 0.0
        %327 = vmatmul.mubr.f32.gmra.mxu0 %v242
        %v328 = vpop.f32.mrf.mxu0
        %v329 = vadd.f32 0.0, %v328
        %v330 = vpop.f32.mrf.mxu0
        %v331 = vadd.f32 0.0, %v330
        %332 = vdwg.mxu0
        %333 = vmatprep.subr.mxu0 0.0
        %334 = vmatpush1.msra.mxu0 0.0
        %335 = vmatprep.subr.mxu0 0.0
        %336 = vmatpush1.msra.mxu0 0.0
        %337 = vmatprep.subr.mxu0 0.0
        %338 = vmatpush1.msra.mxu0 0.0
        %339 = vmatprep.subr.mxu0 0.0
        %340 = vmatpush1.msra.mxu0 0.0
        %341 = vmatprep.subr.mxu0 0.0
        %342 = vmatpush1.msra.mxu0 0.0
        %343 = vmatprep.subr.mxu0 0.0
        %344 = vmatpush1.msra.mxu0 0.0
        %345 = vmatprep.subr.mxu0 0.0
        %346 = vmatpush1.msra.mxu0 0.0
        %347 = vmatprep.subr.mxu0 0.0
        %348 = vmatpush1.msra.mxu0 0.0
        %349 = vmatprep.subr.mxu0 0.0
        %350 = vmatpush1.msra.mxu0 0.0
        %351 = vmatprep.subr.mxu0 0.0
        %352 = vmatpush1.msra.mxu0 0.0
        %353 = vmatprep.subr.mxu0 0.0
        %354 = vmatpush1.msra.mxu0 0.0
        %355 = vmatprep.subr.mxu0 0.0
        %356 = vmatpush1.msra.mxu0 0.0
        %357 = vmatprep.subr.mxu0 0.0
        %358 = vmatpush1.msra.mxu0 0.0
        %359 = vmatprep.subr.mxu0 0.0
        %360 = vmatpush1.msra.mxu0 0.0
        %361 = vmatprep.subr.mxu0 %v220
        %362 = vmatpush1.msra.mxu0 %v219
        %363 = vmatprep.subr.mxu0 %v212
        %364 = vmatpush1.msra.mxu0 %v211
        %365 = vmatprep.subr.mxu0 0.0
        %366 = vmatpush2.msra.mxu0 0.0
        %367 = vmatprep.subr.mxu0 0.0
        %368 = vmatpush2.msra.mxu0 0.0
        %369 = vmatprep.subr.mxu0 0.0
        %370 = vmatpush2.msra.mxu0 0.0
        %371 = vmatprep.subr.mxu0 0.0
        %372 = vmatpush2.msra.mxu0 0.0
        %373 = vmatprep.subr.mxu0 0.0
        %374 = vmatpush2.msra.mxu0 0.0
        %375 = vmatprep.subr.mxu0 0.0
        %376 = vmatpush2.msra.mxu0 0.0
        %377 = vmatprep.subr.mxu0 0.0
        %378 = vmatpush2.msra.mxu0 0.0
        %379 = vmatprep.subr.mxu0 0.0
        %380 = vmatpush2.msra.mxu0 0.0
        %381 = vmatprep.subr.mxu0 0.0
        %382 = vmatpush2.msra.mxu0 0.0
        %383 = vmatprep.subr.mxu0 0.0
        %384 = vmatpush2.msra.mxu0 0.0
        %385 = vmatprep.subr.mxu0 0.0
        %386 = vmatpush2.msra.mxu0 0.0
        %387 = vmatprep.subr.mxu0 0.0
        %388 = vmatpush2.msra.mxu0 0.0
        %389 = vmatprep.subr.mxu0 0.0
        %390 = vmatpush2.msra.mxu0 0.0
        %391 = vmatprep.subr.mxu0 0.0
        %392 = vmatpush2.msra.mxu0 0.0
        %393 = vmatprep.subr.mxu0 0.0
        %394 = vmatpush2.msra.mxu0 0.0
        %395 = vmatprep.subr.mxu0 0.0
        %396 = vmatpush2.msra.mxu0 0.0
        %397 = vmatprep.mubr.f32.mxu0 0.0
        %398 = vmatmul.mubr.f32.gmra.mxu0 %v233
        %v399 = vpop.f32.mrf.mxu0
        %v400 = vadd.f32 0.0, %v399
        %v401 = vpop.f32.mrf.mxu0
        %v402 = vadd.f32 0.0, %v401
        %403 = vmatprep.mubr.f32.mxu0 0.0
        %404 = vmatmul.mubr.f32.gmra.mxu0 %v236
        %v405 = vpop.f32.mrf.mxu0
        %v406 = vadd.f32 0.0, %v405
        %v407 = vpop.f32.mrf.mxu0
        %v408 = vadd.f32 0.0, %v407
        %409 = vmatprep.mubr.f32.mxu0 0.0
        %410 = vmatmul.mubr.f32.gmra.mxu0 %v239
        %v411 = vpop.f32.mrf.mxu0
        %v412 = vadd.f32 0.0, %v411
        %v413 = vpop.f32.mrf.mxu0
        %v414 = vadd.f32 0.0, %v413
        %415 = vmatprep.mubr.f32.mxu0 0.0
        %416 = vmatmul.mubr.f32.gmra.mxu0 %v242
        %v417 = vpop.f32.mrf.mxu0
        %v418 = vadd.f32 0.0, %v417
        %v419 = vpop.f32.mrf.mxu0
        %v420 = vadd.f32 0.0, %v419
        %421 = vdwg.mxu0
        %422 = vmatprep.subr.mxu0 0.0
        %423 = vmatpush1.msra.mxu0 0.0
        %424 = vmatprep.subr.mxu0 0.0
        %425 = vmatpush1.msra.mxu0 0.0
        %426 = vmatprep.subr.mxu0 0.0
        %427 = vmatpush1.msra.mxu0 0.0
        %428 = vmatprep.subr.mxu0 0.0
        %429 = vmatpush1.msra.mxu0 0.0
        %430 = vmatprep.subr.mxu0 0.0
        %431 = vmatpush1.msra.mxu0 0.0
        %432 = vmatprep.subr.mxu0 0.0
        %433 = vmatpush1.msra.mxu0 0.0
        %434 = vmatprep.subr.mxu0 0.0
        %435 = vmatpush1.msra.mxu0 0.0
        %436 = vmatprep.subr.mxu0 0.0
        %437 = vmatpush1.msra.mxu0 0.0
        %438 = vmatprep.subr.mxu0 0.0
        %439 = vmatpush1.msra.mxu0 0.0
        %440 = vmatprep.subr.mxu0 0.0
        %441 = vmatpush1.msra.mxu0 0.0
        %442 = vmatprep.subr.mxu0 0.0
        %443 = vmatpush1.msra.mxu0 0.0
        %444 = vmatprep.subr.mxu0 0.0
        %445 = vmatpush1.msra.mxu0 0.0
        %446 = vmatprep.subr.mxu0 0.0
        %447 = vmatpush1.msra.mxu0 0.0
        %448 = vmatprep.subr.mxu0 0.0
        %449 = vmatpush1.msra.mxu0 0.0
        %450 = vmatprep.subr.mxu0 %v222
        %451 = vmatpush1.msra.mxu0 %v221
        %452 = vmatprep.subr.mxu0 %v214
        %453 = vmatpush1.msra.mxu0 %v213
        %454 = vmatprep.subr.mxu0 0.0
        %455 = vmatpush2.msra.mxu0 0.0
        %456 = vmatprep.subr.mxu0 0.0
        %457 = vmatpush2.msra.mxu0 0.0
        %458 = vmatprep.subr.mxu0 0.0
        %459 = vmatpush2.msra.mxu0 0.0
        %460 = vmatprep.subr.mxu0 0.0
        %461 = vmatpush2.msra.mxu0 0.0
        %462 = vmatprep.subr.mxu0 0.0
        %463 = vmatpush2.msra.mxu0 0.0
        %464 = vmatprep.subr.mxu0 0.0
        %465 = vmatpush2.msra.mxu0 0.0
        %466 = vmatprep.subr.mxu0 0.0
        %467 = vmatpush2.msra.mxu0 0.0
        %468 = vmatprep.subr.mxu0 0.0
        %469 = vmatpush2.msra.mxu0 0.0
        %470 = vmatprep.subr.mxu0 0.0
        %471 = vmatpush2.msra.mxu0 0.0
        %472 = vmatprep.subr.mxu0 0.0
        %473 = vmatpush2.msra.mxu0 0.0
        %474 = vmatprep.subr.mxu0 0.0
        %475 = vmatpush2.msra.mxu0 0.0
        %476 = vmatprep.subr.mxu0 0.0
        %477 = vmatpush2.msra.mxu0 0.0
        %478 = vmatprep.subr.mxu0 0.0
        %479 = vmatpush2.msra.mxu0 0.0
        %480 = vmatprep.subr.mxu0 0.0
        %481 = vmatpush2.msra.mxu0 0.0
        %482 = vmatprep.subr.mxu0 0.0
        %483 = vmatpush2.msra.mxu0 0.0
        %484 = vmatprep.subr.mxu0 0.0
        %485 = vmatpush2.msra.mxu0 0.0
        %486 = vmatprep.mubr.f32.mxu0 0.0
        %487 = vmatmul.mubr.f32.gmra.mxu0 %v233
        %v488 = vpop.f32.mrf.mxu0
        %v489 = vadd.f32 0.0, %v488
        %v490 = vpop.f32.mrf.mxu0
        %v491 = vadd.f32 0.0, %v490
        %492 = vmatprep.mubr.f32.mxu0 0.0
        %493 = vmatmul.mubr.f32.gmra.mxu0 %v236
        %v494 = vpop.f32.mrf.mxu0
        %v495 = vadd.f32 0.0, %v494
        %v496 = vpop.f32.mrf.mxu0
        %v497 = vadd.f32 0.0, %v496
        %498 = vmatprep.mubr.f32.mxu0 0.0
        %499 = vmatmul.mubr.f32.gmra.mxu0 %v239
        %v500 = vpop.f32.mrf.mxu0
        %v501 = vadd.f32 0.0, %v500
        %v502 = vpop.f32.mrf.mxu0
        %v503 = vadd.f32 0.0, %v502
        %504 = vmatprep.mubr.f32.mxu0 0.0
        %505 = vmatmul.mubr.f32.gmra.mxu0 %v242
        %v506 = vpop.f32.mrf.mxu0
        %v507 = vadd.f32 0.0, %v506
        %v508 = vpop.f32.mrf.mxu0
        %v509 = vadd.f32 0.0, %v508
        %510 = vdwg.mxu0
        %511 = vmatprep.subr.mxu0 0.0
        %512 = vmatpush1.msra.mxu0 0.0
        %513 = vmatprep.subr.mxu0 0.0
        %514 = vmatpush1.msra.mxu0 0.0
        %515 = vmatprep.subr.mxu0 0.0
        %516 = vmatpush1.msra.mxu0 0.0
        %517 = vmatprep.subr.mxu0 0.0
        %518 = vmatpush1.msra.mxu0 0.0
        %519 = vmatprep.subr.mxu0 0.0
        %520 = vmatpush1.msra.mxu0 0.0
        %521 = vmatprep.subr.mxu0 0.0
        %522 = vmatpush1.msra.mxu0 0.0
        %523 = vmatprep.subr.mxu0 0.0
        %524 = vmatpush1.msra.mxu0 0.0
        %525 = vmatprep.subr.mxu0 0.0
        %526 = vmatpush1.msra.mxu0 0.0
        %527 = vmatprep.subr.mxu0 0.0
        %528 = vmatpush1.msra.mxu0 0.0
        %529 = vmatprep.subr.mxu0 0.0
        %530 = vmatpush1.msra.mxu0 0.0
        %531 = vmatprep.subr.mxu0 0.0
        %532 = vmatpush1.msra.mxu0 0.0
        %533 = vmatprep.subr.mxu0 0.0
        %534 = vmatpush1.msra.mxu0 0.0
        %535 = vmatprep.subr.mxu0 0.0
        %536 = vmatpush1.msra.mxu0 0.0
        %537 = vmatprep.subr.mxu0 0.0
        %538 = vmatpush1.msra.mxu0 0.0
        %539 = vmatprep.subr.mxu0 %v224
        %540 = vmatpush1.msra.mxu0 %v223
        %541 = vmatprep.subr.mxu0 %v216
        %542 = vmatpush1.msra.mxu0 %v215
        %543 = vmatprep.subr.mxu0 0.0
        %544 = vmatpush2.msra.mxu0 0.0
        %545 = vmatprep.subr.mxu0 0.0
        %546 = vmatpush2.msra.mxu0 0.0
        %547 = vmatprep.subr.mxu0 0.0
        %548 = vmatpush2.msra.mxu0 0.0
        %549 = vmatprep.subr.mxu0 0.0
        %550 = vmatpush2.msra.mxu0 0.0
        %551 = vmatprep.subr.mxu0 0.0
        %552 = vmatpush2.msra.mxu0 0.0
        %553 = vmatprep.subr.mxu0 0.0
        %554 = vmatpush2.msra.mxu0 0.0
        %555 = vmatprep.subr.mxu0 0.0
        %556 = vmatpush2.msra.mxu0 0.0
        %557 = vmatprep.subr.mxu0 0.0
        %558 = vmatpush2.msra.mxu0 0.0
        %559 = vmatprep.subr.mxu0 0.0
        %560 = vmatpush2.msra.mxu0 0.0
        %561 = vmatprep.subr.mxu0 0.0
        %562 = vmatpush2.msra.mxu0 0.0
        %563 = vmatprep.subr.mxu0 0.0
        %564 = vmatpush2.msra.mxu0 0.0
        %565 = vmatprep.subr.mxu0 0.0
        %566 = vmatpush2.msra.mxu0 0.0
        %567 = vmatprep.subr.mxu0 0.0
        %568 = vmatpush2.msra.mxu0 0.0
        %569 = vmatprep.subr.mxu0 0.0
        %570 = vmatpush2.msra.mxu0 0.0
        %571 = vmatprep.subr.mxu0 0.0
        %572 = vmatpush2.msra.mxu0 0.0
        %573 = vmatprep.subr.mxu0 0.0
        %574 = vmatpush2.msra.mxu0 0.0
        %575 = vmatprep.mubr.f32.mxu0 0.0
        %576 = vmatmul.mubr.f32.gmra.mxu0 %v233
        %v577 = vpop.f32.mrf.mxu0
        %v578 = vadd.f32 0.0, %v577
        %v579 = vpop.f32.mrf.mxu0
        %v580 = vadd.f32 0.0, %v579
        %581 = vmatprep.mubr.f32.mxu0 0.0
        %582 = vmatmul.mubr.f32.gmra.mxu0 %v236
        %v583 = vpop.f32.mrf.mxu0
        %v584 = vadd.f32 0.0, %v583
        %v585 = vpop.f32.mrf.mxu0
        %v586 = vadd.f32 0.0, %v585
        %587 = vmatprep.mubr.f32.mxu0 0.0
        %588 = vmatmul.mubr.f32.gmra.mxu0 %v239
        %v589 = vpop.f32.mrf.mxu0
        %v590 = vadd.f32 0.0, %v589
        %v591 = vpop.f32.mrf.mxu0
        %v592 = vadd.f32 0.0, %v591
        %593 = vmatprep.mubr.f32.mxu0 0.0
        %594 = vmatmul.mubr.f32.gmra.mxu0 %v242
        %v595 = vpop.f32.mrf.mxu0
        %v596 = vadd.f32 0.0, %v595
        %v597 = vpop.f32.mrf.mxu0
        %v598 = vadd.f32 0.0, %v597
        %599 = vdwg.mxu0
        %v600 = vmax.f32 %v311, 0.0
        %v601 = vmax.f32 %v313, 0.0
        %v602 = vmax.f32 %v400, 0.0
        %v603 = vmax.f32 %v402, 0.0
        %v604 = vmax.f32 %v489, 0.0
        %v605 = vmax.f32 %v491, 0.0
        %v606 = vmax.f32 %v578, 0.0
        %v607 = vmax.f32 %v580, 0.0
        %v608 = vmax.f32 %v317, 0.0
        %v609 = vmax.f32 %v319, 0.0
        %v610 = vmax.f32 %v406, 0.0
        %v611 = vmax.f32 %v408, 0.0
        %v612 = vmax.f32 %v495, 0.0
        %v613 = vmax.f32 %v497, 0.0
        %v614 = vmax.f32 %v584, 0.0
        %v615 = vmax.f32 %v586, 0.0
        %v616 = vmax.f32 %v323, 0.0
        %v617 = vmax.f32 %v325, 0.0
        %v618 = vmax.f32 %v412, 0.0
        %v619 = vmax.f32 %v414, 0.0
        %v620 = vmax.f32 %v501, 0.0
        %v621 = vmax.f32 %v503, 0.0
        %v622 = vmax.f32 %v590, 0.0
        %v623 = vmax.f32 %v592, 0.0
        %v624 = vmax.f32 %v329, 0.0
        %v625 = vmax.f32 %v331, 0.0
        %v626 = vmax.f32 %v418, 0.0
        %v627 = vmax.f32 %v420, 0.0
        %v628 = vmax.f32 %v507, 0.0
        %v629 = vmax.f32 %v509, 0.0
        %v630 = vmax.f32 %v596, 0.0
        %v631 = vmax.f32 %v598, 0.0
        %vm632 = vcmask 261120
        %v634 = vsel %vm632, %v229, 0
        %v637 = vsel %vm632, %v230, 0
        %639 = vmatprep.subr.mxu0 0.0
        %640 = vmatpush1.msra.mxu0 0.0
        %641 = vmatprep.subr.mxu0 0.0
        %642 = vmatpush1.msra.mxu0 0.0
        %643 = vmatprep.subr.mxu0 0.0
        %644 = vmatpush1.msra.mxu0 0.0
        %645 = vmatprep.subr.mxu0 0.0
        %646 = vmatpush1.msra.mxu0 0.0
        %647 = vmatprep.subr.mxu0 0.0
        %648 = vmatpush1.msra.mxu0 0.0
        %649 = vmatprep.subr.mxu0 0.0
        %650 = vmatpush1.msra.mxu0 0.0
        %651 = vmatprep.subr.mxu0 0.0
        %652 = vmatpush1.msra.mxu0 0.0
        %653 = vmatprep.subr.mxu0 0.0
        %654 = vmatpush1.msra.mxu0 0.0
        %655 = vmatprep.subr.mxu0 0.0
        %656 = vmatpush1.msra.mxu0 0.0
        %657 = vmatprep.subr.mxu0 0.0
        %658 = vmatpush1.msra.mxu0 0.0
        %659 = vmatprep.subr.mxu0 0.0
        %660 = vmatpush1.msra.mxu0 0.0
        %661 = vmatprep.subr.mxu0 0.0
        %662 = vmatpush1.msra.mxu0 0.0
        %663 = vmatprep.subr.mxu0 %v625
        %664 = vmatpush1.msra.mxu0 %v624
        %665 = vmatprep.subr.mxu0 %v617
        %666 = vmatpush1.msra.mxu0 %v616
        %667 = vmatprep.subr.mxu0 %v609
        %668 = vmatpush1.msra.mxu0 %v608
        %669 = vmatprep.subr.mxu0 %v601
        %670 = vmatpush1.msra.mxu0 %v600
        %671 = vmatprep.subr.mxu0 0.0
        %672 = vmatpush2.msra.mxu0 0.0
        %673 = vmatprep.subr.mxu0 0.0
        %674 = vmatpush2.msra.mxu0 0.0
        %675 = vmatprep.subr.mxu0 0.0
        %676 = vmatpush2.msra.mxu0 0.0
        %677 = vmatprep.subr.mxu0 0.0
        %678 = vmatpush2.msra.mxu0 0.0
        %679 = vmatprep.subr.mxu0 0.0
        %680 = vmatpush2.msra.mxu0 0.0
        %681 = vmatprep.subr.mxu0 0.0
        %682 = vmatpush2.msra.mxu0 0.0
        %683 = vmatprep.subr.mxu0 0.0
        %684 = vmatpush2.msra.mxu0 0.0
        %685 = vmatprep.subr.mxu0 0.0
        %686 = vmatpush2.msra.mxu0 0.0
        %687 = vmatprep.subr.mxu0 0.0
        %688 = vmatpush2.msra.mxu0 0.0
        %689 = vmatprep.subr.mxu0 0.0
        %690 = vmatpush2.msra.mxu0 0.0
        %691 = vmatprep.subr.mxu0 0.0
        %692 = vmatpush2.msra.mxu0 0.0
        %693 = vmatprep.subr.mxu0 0.0
        %694 = vmatpush2.msra.mxu0 0.0
        %695 = vmatprep.subr.mxu0 0.0
        %696 = vmatpush2.msra.mxu0 0.0
        %697 = vmatprep.subr.mxu0 0.0
        %698 = vmatpush2.msra.mxu0 0.0
        %699 = vmatprep.subr.mxu0 0.0
        %700 = vmatpush2.msra.mxu0 0.0
        %701 = vmatprep.subr.mxu0 0.0
        %702 = vmatpush2.msra.mxu0 0.0
        %703 = vmatprep.mubr.f32.mxu0 0.0
        %704 = vmatmul.mubr.f32.gmra.mxu0 %v634
        %v705 = vpop.f32.mrf.mxu0
        %v706 = vadd.f32 0.0, %v705
        %v707 = vpop.f32.mrf.mxu0
        %v708 = vadd.f32 0.0, %v707
        %709 = vmatprep.mubr.f32.mxu0 0.0
        %710 = vmatmul.mubr.f32.gmra.mxu0 %v637
        %v711 = vpop.f32.mrf.mxu0
        %v712 = vadd.f32 0.0, %v711
        %v713 = vpop.f32.mrf.mxu0
        %v714 = vadd.f32 0.0, %v713
        %715 = vdwg.mxu0
        %716 = vmatprep.subr.mxu0 0.0
        %717 = vmatpush1.msra.mxu0 0.0
        %718 = vmatprep.subr.mxu0 0.0
        %719 = vmatpush1.msra.mxu0 0.0
        %720 = vmatprep.subr.mxu0 0.0
        %721 = vmatpush1.msra.mxu0 0.0
        %722 = vmatprep.subr.mxu0 0.0
        %723 = vmatpush1.msra.mxu0 0.0
        %724 = vmatprep.subr.mxu0 0.0
        %725 = vmatpush1.msra.mxu0 0.0
        %726 = vmatprep.subr.mxu0 0.0
        %727 = vmatpush1.msra.mxu0 0.0
        %728 = vmatprep.subr.mxu0 0.0
        %729 = vmatpush1.msra.mxu0 0.0
        %730 = vmatprep.subr.mxu0 0.0
        %731 = vmatpush1.msra.mxu0 0.0
        %732 = vmatprep.subr.mxu0 0.0
        %733 = vmatpush1.msra.mxu0 0.0
        %734 = vmatprep.subr.mxu0 0.0
        %735 = vmatpush1.msra.mxu0 0.0
        %736 = vmatprep.subr.mxu0 0.0
        %737 = vmatpush1.msra.mxu0 0.0
        %738 = vmatprep.subr.mxu0 0.0
        %739 = vmatpush1.msra.mxu0 0.0
        %740 = vmatprep.subr.mxu0 %v627
        %741 = vmatpush1.msra.mxu0 %v626
        %742 = vmatprep.subr.mxu0 %v619
        %743 = vmatpush1.msra.mxu0 %v618
        %744 = vmatprep.subr.mxu0 %v611
        %745 = vmatpush1.msra.mxu0 %v610
        %746 = vmatprep.subr.mxu0 %v603
        %747 = vmatpush1.msra.mxu0 %v602
        %748 = vmatprep.subr.mxu0 0.0
        %749 = vmatpush2.msra.mxu0 0.0
        %750 = vmatprep.subr.mxu0 0.0
        %751 = vmatpush2.msra.mxu0 0.0
        %752 = vmatprep.subr.mxu0 0.0
        %753 = vmatpush2.msra.mxu0 0.0
        %754 = vmatprep.subr.mxu0 0.0
        %755 = vmatpush2.msra.mxu0 0.0
        %756 = vmatprep.subr.mxu0 0.0
        %757 = vmatpush2.msra.mxu0 0.0
        %758 = vmatprep.subr.mxu0 0.0
        %759 = vmatpush2.msra.mxu0 0.0
        %760 = vmatprep.subr.mxu0 0.0
        %761 = vmatpush2.msra.mxu0 0.0
        %762 = vmatprep.subr.mxu0 0.0
        %763 = vmatpush2.msra.mxu0 0.0
        %764 = vmatprep.subr.mxu0 0.0
        %765 = vmatpush2.msra.mxu0 0.0
        %766 = vmatprep.subr.mxu0 0.0
        %767 = vmatpush2.msra.mxu0 0.0
        %768 = vmatprep.subr.mxu0 0.0
        %769 = vmatpush2.msra.mxu0 0.0
        %770 = vmatprep.subr.mxu0 0.0
        %771 = vmatpush2.msra.mxu0 0.0
        %772 = vmatprep.subr.mxu0 0.0
        %773 = vmatpush2.msra.mxu0 0.0
        %774 = vmatprep.subr.mxu0 0.0
        %775 = vmatpush2.msra.mxu0 0.0
        %776 = vmatprep.subr.mxu0 0.0
        %777 = vmatpush2.msra.mxu0 0.0
        %778 = vmatprep.subr.mxu0 0.0
        %779 = vmatpush2.msra.mxu0 0.0
        %780 = vmatprep.mubr.f32.mxu0 0.0
        %781 = vmatmul.mubr.f32.gmra.mxu0 %v634
        %v782 = vpop.f32.mrf.mxu0
        %v783 = vadd.f32 0.0, %v782
        %v784 = vpop.f32.mrf.mxu0
        %v785 = vadd.f32 0.0, %v784
        %786 = vmatprep.mubr.f32.mxu0 0.0
        %787 = vmatmul.mubr.f32.gmra.mxu0 %v637
        %v788 = vpop.f32.mrf.mxu0
        %v789 = vadd.f32 0.0, %v788
        %v790 = vpop.f32.mrf.mxu0
        %v791 = vadd.f32 0.0, %v790
        %792 = vdwg.mxu0
        %793 = vmatprep.subr.mxu0 0.0
        %794 = vmatpush1.msra.mxu0 0.0
        %795 = vmatprep.subr.mxu0 0.0
        %796 = vmatpush1.msra.mxu0 0.0
        %797 = vmatprep.subr.mxu0 0.0
        %798 = vmatpush1.msra.mxu0 0.0
        %799 = vmatprep.subr.mxu0 0.0
        %800 = vmatpush1.msra.mxu0 0.0
        %801 = vmatprep.subr.mxu0 0.0
        %802 = vmatpush1.msra.mxu0 0.0
        %803 = vmatprep.subr.mxu0 0.0
        %804 = vmatpush1.msra.mxu0 0.0
        %805 = vmatprep.subr.mxu0 0.0
        %806 = vmatpush1.msra.mxu0 0.0
        %807 = vmatprep.subr.mxu0 0.0
        %808 = vmatpush1.msra.mxu0 0.0
        %809 = vmatprep.subr.mxu0 0.0
        %810 = vmatpush1.msra.mxu0 0.0
        %811 = vmatprep.subr.mxu0 0.0
        %812 = vmatpush1.msra.mxu0 0.0
        %813 = vmatprep.subr.mxu0 0.0
        %814 = vmatpush1.msra.mxu0 0.0
        %815 = vmatprep.subr.mxu0 0.0
        %816 = vmatpush1.msra.mxu0 0.0
        %817 = vmatprep.subr.mxu0 %v629
        %818 = vmatpush1.msra.mxu0 %v628
        %819 = vmatprep.subr.mxu0 %v621
        %820 = vmatpush1.msra.mxu0 %v620
        %821 = vmatprep.subr.mxu0 %v613
        %822 = vmatpush1.msra.mxu0 %v612
        %823 = vmatprep.subr.mxu0 %v605
        %824 = vmatpush1.msra.mxu0 %v604
        %825 = vmatprep.subr.mxu0 0.0
        %826 = vmatpush2.msra.mxu0 0.0
        %827 = vmatprep.subr.mxu0 0.0
        %828 = vmatpush2.msra.mxu0 0.0
        %829 = vmatprep.subr.mxu0 0.0
        %830 = vmatpush2.msra.mxu0 0.0
        %831 = vmatprep.subr.mxu0 0.0
        %832 = vmatpush2.msra.mxu0 0.0
        %833 = vmatprep.subr.mxu0 0.0
        %834 = vmatpush2.msra.mxu0 0.0
        %835 = vmatprep.subr.mxu0 0.0
        %836 = vmatpush2.msra.mxu0 0.0
        %837 = vmatprep.subr.mxu0 0.0
        %838 = vmatpush2.msra.mxu0 0.0
        %839 = vmatprep.subr.mxu0 0.0
        %840 = vmatpush2.msra.mxu0 0.0
        %841 = vmatprep.subr.mxu0 0.0
        %842 = vmatpush2.msra.mxu0 0.0
        %843 = vmatprep.subr.mxu0 0.0
        %844 = vmatpush2.msra.mxu0 0.0
        %845 = vmatprep.subr.mxu0 0.0
        %846 = vmatpush2.msra.mxu0 0.0
        %847 = vmatprep.subr.mxu0 0.0
        %848 = vmatpush2.msra.mxu0 0.0
        %849 = vmatprep.subr.mxu0 0.0
        %850 = vmatpush2.msra.mxu0 0.0
        %851 = vmatprep.subr.mxu0 0.0
        %852 = vmatpush2.msra.mxu0 0.0
        %853 = vmatprep.subr.mxu0 0.0
        %854 = vmatpush2.msra.mxu0 0.0
        %855 = vmatprep.subr.mxu0 0.0
        %856 = vmatpush2.msra.mxu0 0.0
        %857 = vmatprep.mubr.f32.mxu0 0.0
        %858 = vmatmul.mubr.f32.gmra.mxu0 %v634
        %v859 = vpop.f32.mrf.mxu0
        %v860 = vadd.f32 0.0, %v859
        %v861 = vpop.f32.mrf.mxu0
        %v862 = vadd.f32 0.0, %v861
        %863 = vmatprep.mubr.f32.mxu0 0.0
        %864 = vmatmul.mubr.f32.gmra.mxu0 %v637
        %v865 = vpop.f32.mrf.mxu0
        %v866 = vadd.f32 0.0, %v865
        %v867 = vpop.f32.mrf.mxu0
        %v868 = vadd.f32 0.0, %v867
        %869 = vdwg.mxu0
        %870 = vmatprep.subr.mxu0 0.0
        %871 = vmatpush1.msra.mxu0 0.0
        %872 = vmatprep.subr.mxu0 0.0
        %873 = vmatpush1.msra.mxu0 0.0
        %874 = vmatprep.subr.mxu0 0.0
        %875 = vmatpush1.msra.mxu0 0.0
        %876 = vmatprep.subr.mxu0 0.0
        %877 = vmatpush1.msra.mxu0 0.0
        %878 = vmatprep.subr.mxu0 0.0
        %879 = vmatpush1.msra.mxu0 0.0
        %880 = vmatprep.subr.mxu0 0.0
        %881 = vmatpush1.msra.mxu0 0.0
        %882 = vmatprep.subr.mxu0 0.0
        %883 = vmatpush1.msra.mxu0 0.0
        %884 = vmatprep.subr.mxu0 0.0
        %885 = vmatpush1.msra.mxu0 0.0
        %886 = vmatprep.subr.mxu0 0.0
        %887 = vmatpush1.msra.mxu0 0.0
        %888 = vmatprep.subr.mxu0 0.0
        %889 = vmatpush1.msra.mxu0 0.0
        %890 = vmatprep.subr.mxu0 0.0
        %891 = vmatpush1.msra.mxu0 0.0
        %892 = vmatprep.subr.mxu0 0.0
        %893 = vmatpush1.msra.mxu0 0.0
        %894 = vmatprep.subr.mxu0 %v631
        %895 = vmatpush1.msra.mxu0 %v630
        %896 = vmatprep.subr.mxu0 %v623
        %897 = vmatpush1.msra.mxu0 %v622
        %898 = vmatprep.subr.mxu0 %v615
        %899 = vmatpush1.msra.mxu0 %v614
        %900 = vmatprep.subr.mxu0 %v607
        %901 = vmatpush1.msra.mxu0 %v606
        %902 = vmatprep.subr.mxu0 0.0
        %903 = vmatpush2.msra.mxu0 0.0
        %904 = vmatprep.subr.mxu0 0.0
        %905 = vmatpush2.msra.mxu0 0.0
        %906 = vmatprep.subr.mxu0 0.0
        %907 = vmatpush2.msra.mxu0 0.0
        %908 = vmatprep.subr.mxu0 0.0
        %909 = vmatpush2.msra.mxu0 0.0
        %910 = vmatprep.subr.mxu0 0.0
        %911 = vmatpush2.msra.mxu0 0.0
        %912 = vmatprep.subr.mxu0 0.0
        %913 = vmatpush2.msra.mxu0 0.0
        %914 = vmatprep.subr.mxu0 0.0
        %915 = vmatpush2.msra.mxu0 0.0
        %916 = vmatprep.subr.mxu0 0.0
        %917 = vmatpush2.msra.mxu0 0.0
        %918 = vmatprep.subr.mxu0 0.0
        %919 = vmatpush2.msra.mxu0 0.0
        %920 = vmatprep.subr.mxu0 0.0
        %921 = vmatpush2.msra.mxu0 0.0
        %922 = vmatprep.subr.mxu0 0.0
        %923 = vmatpush2.msra.mxu0 0.0
        %924 = vmatprep.subr.mxu0 0.0
        %925 = vmatpush2.msra.mxu0 0.0
        %926 = vmatprep.subr.mxu0 0.0
        %927 = vmatpush2.msra.mxu0 0.0
        %928 = vmatprep.subr.mxu0 0.0
        %929 = vmatpush2.msra.mxu0 0.0
        %930 = vmatprep.subr.mxu0 0.0
        %931 = vmatpush2.msra.mxu0 0.0
        %932 = vmatprep.subr.mxu0 0.0
        %933 = vmatpush2.msra.mxu0 0.0
        %934 = vmatprep.mubr.f32.mxu0 0.0
        %935 = vmatmul.mubr.f32.gmra.mxu0 %v634
        %v936 = vpop.f32.mrf.mxu0
        %v937 = vadd.f32 0.0, %v936
        %v938 = vpop.f32.mrf.mxu0
        %v939 = vadd.f32 0.0, %v938
        %940 = vmatprep.mubr.f32.mxu0 0.0
        %941 = vmatmul.mubr.f32.gmra.mxu0 %v637
        %v942 = vpop.f32.mrf.mxu0
        %v943 = vadd.f32 0.0, %v942
        %v944 = vpop.f32.mrf.mxu0
        %v945 = vadd.f32 0.0, %v944
        %946 = vdwg.mxu0
        %947 = vst [vmem:[%s206] sm:$0xff] %v706
        %948 = vst [vmem:[%s206 + $0x8] sm:$0xff] %v708
        %949 = vst [vmem:[%s206 + $0x10] sm:$0xff] %v783
        %950 = vst [vmem:[%s206 + $0x18] sm:$0xff] %v785
        %951 = vst [vmem:[%s206 + $0x20] sm:$0xff] %v860
        %952 = vst [vmem:[%s206 + $0x28] sm:$0xff] %v862
        %953 = vst [vmem:[%s206 + $0x30] sm:$0xff] %v937
        %954 = vst [vmem:[%s206 + $0x38] sm:$0xff] %v939
        %955 = vst [vmem:[%s206 + $0x40] sm:$0xff] %v712
        %956 = vst [vmem:[%s206 + $0x48] sm:$0xff] %v714
        %957 = vst [vmem:[%s206 + $0x50] sm:$0xff] %v789
        %958 = vst [vmem:[%s206 + $0x58] sm:$0xff] %v791
        %959 = vst [vmem:[%s206 + $0x60] sm:$0xff] %v866
        %960 = vst [vmem:[%s206 + $0x68] sm:$0xff] %v868
        %961 = vst [vmem:[%s206 + $0x70] sm:$0xff] %v943
        %962 = vst [vmem:[%s206 + $0x78] sm:$0xff] %v945
        %s963 = sand.u32 %s112, 1
        %s964 = scalar_lea.sflag [#allocation4], %s963
        %s965 = sand.u32 %s112, 1
        %s966 = smul.addr %s965, 128
        %s967 = scalar_lea.vmem [#allocation5], %s966
        // Predicated region
        $region37: #{tpu_custom_call.1} parent=31 // pred_check
          %p968 = pneg %p122
        $region38: #{tpu_custom_call.1} parent=31 // pred_check_branch
          %970 = sbr.rel (%p968) target = $region40
        $region39: #{tpu_custom_call.1} parent=31 // pred_region
          %s971 = smul.u32 8, %s25
          %s973 = ssub.s32 2048, 2048
          %974 = vsyncadd %s964, %s973
          %s975 = smul.addr %s24, 16
          %s976 = sadd.s32 %s971, %s975
          %s977 = smul.addr %s976, 128
          %s978 = scalar_lea.hbm %s3, %s977
          %s979 = sshll.u32 %s967, 4
          %s980 = int_to_ptr.vmem [resolvable:$true] %s979
          %985 = dma.vmem_to_hbm [thread:$0]  %s980, 2048, %s978, %s964, 1024, 1024, 64
        $region40: #{tpu_custom_call.1} parent=31 // pred_fallthru
          _
      $region32: #{tpu_custom_call.1} parent=5 // pred_fallthru
        _
      %p986 = scmp.le.s32.totalorder 2, %s15
      // Predicated region
      $region41: #{tpu_custom_call.1} parent=5 // pred_check
        %p987 = pneg %p986
      $region42: #{tpu_custom_call.1} parent=5 // pred_check_branch
        %989 = sbr.rel (%p987) target = $region44
      $region43: #{tpu_custom_call.1} parent=5 // pred_region
        %s990 = ssub.s32 %s15, 2
        // Predicated region
        $region45: #{tpu_custom_call.1} parent=43 // pred_check
          %p991 = pneg %p128
        $region46: #{tpu_custom_call.1} parent=43 // pred_check_branch
          %993 = sbr.rel (%p991) target = $region48
        $region47: #{tpu_custom_call.1} parent=43 // pred_region
          %s994 = sand.u32 %s113, 1
          %s995 = scalar_lea.sflag [#allocation4], %s994
          %s996 = sand.u32 %s113, 1
          %s997 = smul.addr %s996, 128
          %s998 = scalar_lea.vmem [#allocation5], %s997
          %999 = dma.done %s995, 2048
        $region48: #{tpu_custom_call.1} parent=43 // pred_fallthru
          _
      $region44: #{tpu_custom_call.1} parent=5 // pred_fallthru
        _
    $region6: #{tpu_custom_call.1} parent=1 // loop_footer
      %s19 = sadd.s32 1, %s15
    $region7: #{tpu_custom_call.1} parent=1 // loop_footer_branch
      %14 = sbr.rel target = $region3
    $region8: #{tpu_custom_call.1} parent=1 // loop_exit
      _
    %1000 = vsyncpa [#allocation3], 1
    %s1001 = scalar_lea.sflag [#allocation3], 1
    %1002 = vsyncpa %s1001, 1
    %1003 = vsyncpa [#allocation4], 1
    %s1004 = scalar_lea.sflag [#allocation4], 1
    %1005 = vsyncpa %s1004, 1

</llo_original>
